<compile_context>
chip_gen: v5e
topology: v5e:2x2
jax: 0.10.0
libtpu: 0.0.40
codegen_flags: <defaults>
</compile_context>

<pallas_src>
import functools
import math

import jax
import jax.numpy as jnp
from jax.experimental import pallas as pl
from jax.experimental.pallas import tpu as pltpu


def _coupling_kernel(xa_ref, xb_ref, w1t_ref, b1_ref, w2t_ref, b2_ref,
                     w3p_ref, w3c_ref, w3n_ref, b3f_ref, b3l_ref, b3c_ref,
                     out_ref, *, W, HW):
    """One batch-tile of the coupling network.

    Lane axis is the flattened (b, h, w) index (n = (b*H + h)*W + w), sublane axis is
    the half-channel dim.  Conv taps over H are shifts by +-W along the lane axis.

    xa_ref, xb_ref : [Ci, N]      N = m_tile * H * W
    w1t_ref        : [F, 3*Ci]    conv1 (3,1) weights, taps stacked along K
    w2t_ref        : [F, F]       conv2 1x1 weights
    w3{p,c,n}_ref  : [Ci, F]      ZeroConv2d taps (exp(3*scale) folded in)
    b3f/b3l_ref    : [Ci, 1]      pad-with-1 boundary biases (row-sums of w3p / w3n)
    b3c_ref        : [Ci, 1]      ZeroConv2d bias (scaled)
    out_ref        : [Ci, N]      x_b + net(x_a)
    """
    _, N = xa_ref.shape
    cdt = w1t_ref.dtype            # MXU operand dtype (bf16 on v6e/v7x, else f32)
    f32 = jnp.float32

    # Boundary masks along the flat lane axis (grid-step invariant).
    pos = jax.lax.broadcasted_iota(jnp.int32, (1, N), 1) % HW
    at_first = pos < W             # h == 0     -> "previous" row is the pad row
    at_last = pos >= HW - W        # h == H-1   -> "next" row is the pad row

    # conv1: (3,1) conv, zero padding on H, ReLU.  Taps are built by rolling the
    # small Ci-row input by +-W lanes (wrapped positions are exactly the masked
    # boundary positions) and stacked along K, so the 3 taps fuse into one MXU pass.
    xa = xa_ref[...].astype(f32)
    prev = jnp.where(at_first, 0.0, pltpu.roll(xa, shift=W % N, axis=1))
    nxt = jnp.where(at_last, 0.0, pltpu.roll(xa, shift=(N - W) % N, axis=1))
    taps = jnp.concatenate([prev, xa, nxt], axis=0).astype(cdt)       # [3*Ci, N]
    h = jnp.dot(w1t_ref[...], taps, preferred_element_type=f32)
    h = jnp.maximum(h + b1_ref[...], 0.0)

    # conv2: 1x1 conv + ReLU (the big MXU pass, K = M = F).
    h = jnp.dot(w2t_ref[...], h.astype(cdt), preferred_element_type=f32)
    h = jnp.maximum(h + b2_ref[...], 0.0)

    # ZeroConv2d, "roll the output": three K=F dots produce Ci-row partials; the
    # prev/next partials are shifted by +-W lanes and the pad-with-1 boundary turns
    # into the per-row biases b3f / b3l.  No [3F, N] temporary, no F-row rolls.
    hc = h.astype(cdt)
    y_prev = jnp.dot(w3p_ref[...], hc, preferred_element_type=f32)    # [Ci, N]
    y_cur = jnp.dot(w3c_ref[...], hc, preferred_element_type=f32)
    y_next = jnp.dot(w3n_ref[...], hc, preferred_element_type=f32)
    z = y_cur + b3c_ref[...]
    z = z + jnp.where(at_first, b3f_ref[...],
                      pltpu.roll(y_prev, shift=W % N, axis=1))
    z = z + jnp.where(at_last, b3l_ref[...],
                      pltpu.roll(y_next, shift=(N - W) % N, axis=1))

    # Additive coupling on the b half (residual half stays f32 end-to-end).
    out_ref[...] = (xb_ref[...].astype(f32) + z).astype(out_ref.dtype)


def _chip_config():
    """Per-generation defaults: MXU operand dtype, scoped-VMEM limit, TC count."""
    try:
        kind = jax.devices()[0].device_kind.lower()
    except Exception:  # pragma: no cover - defensive
        kind = ""
    if "v7" in kind or "7x" in kind:
        # 64 MiB VMEM per TensorCore, 2 TensorCores per chip, bf16-native MXU.
        return {"cores": 2, "vmem_limit": 48 << 20, "dot_dtype": jnp.bfloat16}
    if "v6" in kind:
        # 128 MiB VMEM, 1 TensorCore, bf16-native MXU/VPU.
        return {"cores": 1, "vmem_limit": 96 << 20, "dot_dtype": jnp.bfloat16}
    if "v5e" in kind or ("v5" in kind and "lite" in kind):
        # v5e: single TC, 128 MiB VMEM, no bf16 VPU/EUP -> keep f32 operands.
        return {"cores": 1, "vmem_limit": 96 << 20, "dot_dtype": jnp.float32}
    # Unknown chip: conservative (compiler-default VMEM limit, f32 operands).
    return {"cores": 1, "vmem_limit": None, "dot_dtype": jnp.float32}


def _plan_batch_tiling(B, P, *, lane_budget, cores):
    """Pick images-per-tile so each block's lane count (m_tile * P) is a multiple of
    128 (lane-dense), tiles are as large as the VMEM-derived lane budget allows, and
    the number of tiles is roughly a multiple of the chip's TensorCore count."""
    unit = max(1, 128 // math.gcd(128, P))           # images per lane-dense granule
    cap = max(unit, ((max(lane_budget, P) // P) // unit) * unit)
    groups = max(1, cores)
    k = 1
    while True:
        m = -(-B // (groups * k))                     # ceil: target images per tile
        m = max(unit, -(-m // unit) * unit)           # round up to granule
        if m <= cap:
            break
        k += 1
    n = -(-B // m)                                    # ceil
    return m, n, m * n


def affine_coupling_forward(x, params, *, dot_dtype=None, target_block_lanes=None):
    """x: NCHW [B, C, H, W]. Returns (concat([x_a, x_b + net(x_a)], 1), logdet=0),
    matching PyTorch AffineCoupling.forward (additive coupling).

    dot_dtype: MXU operand dtype override (default: per-chip — bf16 on v6e/v7x,
    f32 on v5e).  Accumulation is always f32; x_b / output stay in x.dtype.
    """
    B, C, H, W = x.shape
    assert C % 2 == 0
    Ci = C // 2
    w1, b1, w2, b2, w3, b3, scale = params            # PyTorch-layout parameters
    F = w1.shape[0]
    P = H * W
    f32 = jnp.float32

    cfg = _chip_config()
    if dot_dtype is None:
        dot_dtype = cfg["dot_dtype"]
    dot_dtype = jnp.dtype(dot_dtype)

    # ---- VMEM-derived tile planning (per-chip) ----
    if target_block_lanes is None:
        budget = cfg["vmem_limit"] if cfg["vmem_limit"] is not None else (16 << 20)
        weight_bytes = 2 * dot_dtype.itemsize * (3 * Ci * F + F * F + 3 * Ci * F)
        usable = int(0.70 * budget) - weight_bytes - (1 << 20)
        bytes_per_lane = 16 * F + 84 * Ci             # live intermediates + blocks
        target_block_lanes = max(2 * 128, usable // bytes_per_lane)
    m_tile, n_tiles, b_pad = _plan_batch_tiling(
        B, P, lane_budget=int(target_block_lanes), cores=cfg["cores"])
    lt = m_tile * P

    # ---- activation layout: channels-to-front only (H/W order preserved) ----
    x_cl = jnp.transpose(x, (1, 0, 2, 3)).reshape(C, B * P)
    xa_l = x_cl[:Ci].astype(dot_dtype)                # streamed operand (maybe bf16)
    xb_l = x_cl[Ci:]                                  # residual half: keep x.dtype
    if b_pad != B:
        pad = (b_pad - B) * P
        xa_l = jnp.pad(xa_l, ((0, 0), (0, pad)))
        xb_l = jnp.pad(xb_l, ((0, 0), (0, pad)))

    # ---- weight plumbing (tiny, done once in XLA) ----
    # conv1 weight [F, Ci, 3, 1] -> [F, 3*Ci], column index = tap*Ci + cin.
    w1t = jnp.transpose(w1[:, :, :, 0].astype(f32), (0, 2, 1)).reshape(F, 3 * Ci)
    w2t = w2[:, :, 0, 0].astype(f32)                  # [F_out, F_in]
    e3s = jnp.exp(3.0 * scale.reshape(Ci).astype(f32))
    w3s = w3[:, :, :, 0].astype(f32) * e3s[:, None, None]          # [Ci, F, 3]
    w3p, w3c, w3n = w3s[:, :, 0], w3s[:, :, 1], w3s[:, :, 2]
    b1c = b1.reshape(F, 1).astype(f32)
    b2c = b2.reshape(F, 1).astype(f32)
    b3c = (b3.reshape(Ci).astype(f32) * e3s).reshape(Ci, 1)
    b3f = jnp.sum(w3p, axis=1, keepdims=True)         # pad-with-1 boundary @ h == 0
    b3l = jnp.sum(w3n, axis=1, keepdims=True)         # pad-with-1 boundary @ h == H-1
    w1t = w1t.astype(dot_dtype)
    w2t = w2t.astype(dot_dtype)
    w3p = w3p.astype(dot_dtype)
    w3c = w3c.astype(dot_dtype)
    w3n = w3n.astype(dot_dtype)

    kernel = functools.partial(_coupling_kernel, W=W, HW=P)
    out_l = pl.pallas_call(
        kernel,
        out_shape=jax.ShapeDtypeStruct((Ci, b_pad * P), x.dtype),
        grid_spec=pltpu.PrefetchScalarGridSpec(
            num_scalar_prefetch=0,
            grid=(n_tiles,),
            in_specs=[
                pl.BlockSpec((Ci, lt), lambda i: (0, i)),        # x_a tile
                pl.BlockSpec((Ci, lt), lambda i: (0, i)),        # x_b tile
                pl.BlockSpec((F, 3 * Ci), lambda i: (0, 0)),     # w1 (stacked taps)
                pl.BlockSpec((F, 1), lambda i: (0, 0)),          # b1
                pl.BlockSpec((F, F), lambda i: (0, 0)),          # w2
                pl.BlockSpec((F, 1), lambda i: (0, 0)),          # b2
                pl.BlockSpec((Ci, F), lambda i: (0, 0)),         # w3 tap k=0 (scaled)
                pl.BlockSpec((Ci, F), lambda i: (0, 0)),         # w3 tap k=1 (scaled)
                pl.BlockSpec((Ci, F), lambda i: (0, 0)),         # w3 tap k=2 (scaled)
                pl.BlockSpec((Ci, 1), lambda i: (0, 0)),         # boundary bias h==0
                pl.BlockSpec((Ci, 1), lambda i: (0, 0)),         # boundary bias h==H-1
                pl.BlockSpec((Ci, 1), lambda i: (0, 0)),         # b3 (scaled)
            ],
            out_specs=pl.BlockSpec((Ci, lt), lambda i: (0, i)),
        ),
        compiler_params=pltpu.CompilerParams(
            dimension_semantics=("parallel",),
            vmem_limit_bytes=cfg["vmem_limit"]),
    )(xa_l, xb_l, w1t, b1c, w2t, b2c, w3p, w3c, w3n, b3f, b3l, b3c)

    # ---- back to NCHW (channels-from-front only; H/W order untouched) ----
    out_b = jnp.transpose(out_l[:, :B * P].reshape(Ci, B, H, W), (1, 0, 2, 3))
    out = jnp.concatenate([x[:, :Ci], out_b.astype(x.dtype)], axis=1)
    logdet = jnp.zeros((), x.dtype)
    return out, logdet


def init_params(key, in_channel, filter_size):
    """PyTorch-layout parameters with PyTorch init: conv1/conv2 weights ~ N(0, 0.05),
    their biases 0; ZeroConv2d weight / bias / scale all zero."""
    Ci = in_channel // 2
    F = filter_size
    k1, k2 = jax.random.split(key)
    w1 = 0.05 * jax.random.normal(k1, (F, Ci, 3, 1), jnp.float32)
    b1 = jnp.zeros((F,), jnp.float32)
    w2 = 0.05 * jax.random.normal(k2, (F, F, 1, 1), jnp.float32)
    b2 = jnp.zeros((F,), jnp.float32)
    w3 = jnp.zeros((Ci, F, 3, 1), jnp.float32)
    b3 = jnp.zeros((Ci,), jnp.float32)
    scale = jnp.zeros((1, Ci, 1, 1), jnp.float32)
    return (w1, b1, w2, b2, w3, b3, scale)


def _reference_forward(x, params):
    """Pure-JAX (XLA) mirror of the PyTorch AffineCoupling.forward, for checking."""
    B, C, H, W = x.shape
    Ci = C // 2
    w1, b1, w2, b2, w3, b3, scale = params
    x_a, x_b = x[:, :Ci], x[:, Ci:]
    hp = jax.lax.Precision.HIGHEST

    def conv_k31(inp, w, b, pad_value):
        padded = jnp.pad(inp, ((0, 0), (0, 0), (1, 1), (0, 0)),
                         constant_values=pad_value)
        out = sum(jnp.einsum('bchw,oc->bohw', padded[:, :, k:k + H, :],
                             w[:, :, k, 0], precision=hp) for k in range(3))
        return out + b[None, :, None, None]

    h = jax.nn.relu(conv_k31(x_a, w1, b1, 0.0))
    h = jax.nn.relu(jnp.einsum('bchw,oc->bohw', h, w2[:, :, 0, 0], precision=hp)
                    + b2[None, :, None, None])
    z = conv_k31(h, w3, b3, 1.0) * jnp.exp(scale * 3.0)
    return jnp.concatenate([x_a, x_b + z], axis=1), jnp.zeros((), x.dtype)


if __name__ == "__main__":
    B, C, H, W = 2, 4, 16, 16
    filter_size = 32

    key = jax.random.PRNGKey(0)
    kx, kp, kq = jax.random.split(key, 3)
    x = jax.random.normal(kx, (B, C, H, W), jnp.float32)

    fwd_auto = jax.jit(affine_coupling_forward)            # chip-default dot dtype
    fwd_f32 = jax.jit(functools.partial(affine_coupling_forward,
                                        dot_dtype=jnp.float32))

    # 1) Reference init: ZeroConv2d is zero-initialized, so net(x_a) == 0 and
    #    out == x exactly (even with bf16 operands, since x_b stays in f32).
    params0 = init_params(kp, C, filter_size)
    out0, logdet0 = fwd_auto(x, params0)
    out0 = jax.block_until_ready(out0)
    assert out0.shape == x.shape
    assert jnp.allclose(out0, x, atol=1e-6), "zero-init coupling must be identity"
    assert float(logdet0) == 0.0

    # 2) Random non-zero weights: exercises conv taps, boundary padding (0 for
    #    conv1, 1 for ZeroConv2d), the folded exp(3*scale) and roll-the-output.
    ks = jax.random.split(kq, 7)
    w1, b1, w2, b2, w3, b3, scale = params0
    params1 = (
        0.05 * jax.random.normal(ks[0], w1.shape, jnp.float32),
        0.05 * jax.random.normal(ks[1], b1.shape, jnp.float32),
        0.05 * jax.random.normal(ks[2], w2.shape, jnp.float32),
        0.05 * jax.random.normal(ks[3], b2.shape, jnp.float32),
        0.05 * jax.random.normal(ks[4], w3.shape, jnp.float32),
        0.05 * jax.random.normal(ks[5], b3.shape, jnp.float32),
        0.10 * jax.random.normal(ks[6], scale.shape, jnp.float32),
    )
    ref1, _ = _reference_forward(x, params1)

    out_f32, _ = fwd_f32(x, params1)                       # tight check, f32 operands
    out_f32, ref1 = jax.block_until_ready((out_f32, ref1))
    err_f32 = float(jnp.max(jnp.abs(out_f32 - ref1)))
    assert jnp.allclose(out_f32, ref1, atol=5e-3, rtol=5e-3), f"f32 |err| = {err_f32}"

    out_auto, _ = fwd_auto(x, params1)                     # chip default (maybe bf16)
    out_auto = jax.block_until_ready(out_auto)
    err_auto = float(jnp.max(jnp.abs(out_auto - ref1)))
    assert jnp.allclose(out_auto, ref1, atol=3e-2, rtol=3e-2), f"auto |err| = {err_auto}"

    print("KERNEL_OK")
</pallas_src>

<mosaic_0001>
module attributes {stable_mosaic.version = 11 : i64} {
  func.func @_coupling_kernel(%arg0: i32, %arg1: memref<2x512xf32, #tpu.memory_space<vmem>>, %arg2: memref<2x512xf32, #tpu.memory_space<vmem>>, %arg3: memref<32x6xf32, #tpu.memory_space<vmem>>, %arg4: memref<32x1xf32, #tpu.memory_space<vmem>>, %arg5: memref<32x32xf32, #tpu.memory_space<vmem>>, %arg6: memref<32x1xf32, #tpu.memory_space<vmem>>, %arg7: memref<2x32xf32, #tpu.memory_space<vmem>>, %arg8: memref<2x32xf32, #tpu.memory_space<vmem>>, %arg9: memref<2x32xf32, #tpu.memory_space<vmem>>, %arg10: memref<2x1xf32, #tpu.memory_space<vmem>>, %arg11: memref<2x1xf32, #tpu.memory_space<vmem>>, %arg12: memref<2x1xf32, #tpu.memory_space<vmem>>, %arg13: memref<2x512xf32, #tpu.memory_space<vmem>>) attributes {dimension_semantics = [#tpu.dimension_semantics<parallel>], iteration_bounds = array<i64: 1>, scalar_prefetch = 0 : i64, scratch_operands = 0 : i64, tpu.core_type = #tpu.core_type<tc>, window_params = [{transform_indices = @transform_0, window_bounds = array<i64: 2, 512>}, {transform_indices = @transform_1, window_bounds = array<i64: 2, 512>}, {pipeline_mode = #tpu.pipeline_mode<synchronous>, transform_indices = @transform_2, window_bounds = array<i64: 32, 6>}, {pipeline_mode = #tpu.pipeline_mode<synchronous>, transform_indices = @transform_3, window_bounds = array<i64: 32, 1>}, {pipeline_mode = #tpu.pipeline_mode<synchronous>, transform_indices = @transform_4, window_bounds = array<i64: 32, 32>}, {pipeline_mode = #tpu.pipeline_mode<synchronous>, transform_indices = @transform_5, window_bounds = array<i64: 32, 1>}, {pipeline_mode = #tpu.pipeline_mode<synchronous>, transform_indices = @transform_6, window_bounds = array<i64: 2, 32>}, {pipeline_mode = #tpu.pipeline_mode<synchronous>, transform_indices = @transform_7, window_bounds = array<i64: 2, 32>}, {pipeline_mode = #tpu.pipeline_mode<synchronous>, transform_indices = @transform_8, window_bounds = array<i64: 2, 32>}, {pipeline_mode = #tpu.pipeline_mode<synchronous>, transform_indices = @transform_9, window_bounds = array<i64: 2, 1>}, {pipeline_mode = #tpu.pipeline_mode<synchronous>, transform_indices = @transform_10, window_bounds = array<i64: 2, 1>}, {pipeline_mode = #tpu.pipeline_mode<synchronous>, transform_indices = @transform_11, window_bounds = array<i64: 2, 1>}, {transform_indices = @transform_12, window_bounds = array<i64: 2, 512>}]} {
    %0 = tpu.iota {dimensions = array<i32: 1>} : vector<1x512xi32>
    %c256_i32 = arith.constant 256 : i32
    %c0_i32 = arith.constant 0 : i32
    %1 = arith.cmpi eq, %c256_i32, %c0_i32 : i32
    %c1_i32 = arith.constant 1 : i32
    %2 = arith.select %1, %c1_i32, %c256_i32 : i32
    %3 = vector.broadcast %2 : i32 to vector<1x512xi32>
    %4 = arith.remsi %0, %3 : vector<1x512xi32>
    %c0_i32_0 = arith.constant 0 : i32
    %5 = vector.broadcast %c0_i32_0 : i32 to vector<1x512xi32>
    %6 = arith.cmpi ne, %4, %5 : vector<1x512xi32>
    %c0_i32_1 = arith.constant 0 : i32
    %7 = vector.broadcast %c0_i32_1 : i32 to vector<1x512xi32>
    %8 = arith.cmpi slt, %4, %7 : vector<1x512xi32>
    %c0_i32_2 = arith.constant 0 : i32
    %9 = arith.cmpi slt, %2, %c0_i32_2 : i32
    %10 = vector.broadcast %9 : i1 to vector<1x512xi1>
    %11 = vector.broadcast %10 : vector<1x512xi1> to vector<1x512xi1>
    %12 = arith.xori %8, %11 : vector<1x512xi1>
    %13 = arith.andi %12, %6 : vector<1x512xi1>
    %14 = vector.broadcast %2 : i32 to vector<1x512xi32>
    %15 = arith.addi %4, %14 : vector<1x512xi32>
    %16 = arith.select %13, %15, %4 : vector<1x512xi1>, vector<1x512xi32>
    %c16_i32 = arith.constant 16 : i32
    %17 = vector.broadcast %c16_i32 : i32 to vector<1x512xi32>
    %18 = arith.cmpi slt, %16, %17 : vector<1x512xi32>
    %c240_i32 = arith.constant 240 : i32
    %19 = vector.broadcast %c240_i32 : i32 to vector<1x512xi32>
    %20 = arith.cmpi sge, %16, %19 : vector<1x512xi32>
    %c0 = arith.constant 0 : index
    %c0_3 = arith.constant 0 : index
    %21 = vector.load %arg1[%c0, %c0_3] : memref<2x512xf32, #tpu.memory_space<vmem>>, vector<2x512xf32>
    %c16_i32_4 = arith.constant 16 : i32
    %22 = tpu.dynamic_rotate %21 by %c16_i32_4 dim 1 : vector<2x512xf32>, i32 -> vector<2x512xf32>
    %cst = arith.constant 0.000000e+00 : f32
    %23 = vector.shape_cast %18 : vector<1x512xi1> to vector<1x512xi1>
    %24 = vector.broadcast %23 : vector<1x512xi1> to vector<2x512xi1>
    %25 = vector.broadcast %cst : f32 to vector<2x512xf32>
    %26 = arith.select %24, %25, %22 : vector<2x512xi1>, vector<2x512xf32>
    %c496_i32 = arith.constant 496 : i32
    %27 = tpu.dynamic_rotate %21 by %c496_i32 dim 1 : vector<2x512xf32>, i32 -> vector<2x512xf32>
    %cst_5 = arith.constant 0.000000e+00 : f32
    %28 = vector.shape_cast %20 : vector<1x512xi1> to vector<1x512xi1>
    %29 = vector.broadcast %28 : vector<1x512xi1> to vector<2x512xi1>
    %30 = vector.broadcast %cst_5 : f32 to vector<2x512xf32>
    %31 = arith.select %29, %30, %27 : vector<2x512xi1>, vector<2x512xf32>
    %32 = tpu.concatenate %26, %21, %31 in 0 : vector<2x512xf32>, vector<2x512xf32>, vector<2x512xf32> -> vector<6x512xf32>
    %c0_6 = arith.constant 0 : index
    %c0_7 = arith.constant 0 : index
    %33 = vector.load %arg3[%c0_6, %c0_7] : memref<32x6xf32, #tpu.memory_space<vmem>>, vector<32x6xf32>
    %cst_8 = arith.constant dense<0.000000e+00> : vector<32x512xf32>
    %34 = tpu.matmul %33, %32, %cst_8 {dimension_numbers = #tpu.dot_dimension_numbers<[1], [0], [0], [1], [0, 0, 1, 1], [], []>} : vector<32x6xf32>, vector<6x512xf32>, vector<32x512xf32> -> vector<32x512xf32>
    %c0_9 = arith.constant 0 : index
    %c0_10 = arith.constant 0 : index
    %35 = vector.load %arg4[%c0_9, %c0_10] : memref<32x1xf32, #tpu.memory_space<vmem>>, vector<32x1xf32>
    %36 = vector.broadcast %35 : vector<32x1xf32> to vector<32x512xf32>
    %37 = arith.addf %34, %36 : vector<32x512xf32>
    %cst_11 = arith.constant 0.000000e+00 : f32
    %38 = vector.broadcast %cst_11 : f32 to vector<32x512xf32>
    %39 = arith.maximumf %37, %38 : vector<32x512xf32>
    %c0_12 = arith.constant 0 : index
    %c0_13 = arith.constant 0 : index
    %40 = vector.load %arg5[%c0_12, %c0_13] : memref<32x32xf32, #tpu.memory_space<vmem>>, vector<32x32xf32>
    %cst_14 = arith.constant dense<0.000000e+00> : vector<32x512xf32>
    %41 = tpu.matmul %40, %39, %cst_14 {dimension_numbers = #tpu.dot_dimension_numbers<[1], [0], [0], [1], [0, 0, 1, 1], [], []>} : vector<32x32xf32>, vector<32x512xf32>, vector<32x512xf32> -> vector<32x512xf32>
    %c0_15 = arith.constant 0 : index
    %c0_16 = arith.constant 0 : index
    %42 = vector.load %arg6[%c0_15, %c0_16] : memref<32x1xf32, #tpu.memory_space<vmem>>, vector<32x1xf32>
    %43 = vector.broadcast %42 : vector<32x1xf32> to vector<32x512xf32>
    %44 = arith.addf %41, %43 : vector<32x512xf32>
    %cst_17 = arith.constant 0.000000e+00 : f32
    %45 = vector.broadcast %cst_17 : f32 to vector<32x512xf32>
    %46 = arith.maximumf %44, %45 : vector<32x512xf32>
    %c0_18 = arith.constant 0 : index
    %c0_19 = arith.constant 0 : index
    %47 = vector.load %arg7[%c0_18, %c0_19] : memref<2x32xf32, #tpu.memory_space<vmem>>, vector<2x32xf32>
    %cst_20 = arith.constant dense<0.000000e+00> : vector<2x512xf32>
    %48 = tpu.matmul %47, %46, %cst_20 {dimension_numbers = #tpu.dot_dimension_numbers<[1], [0], [0], [1], [0, 0, 1, 1], [], []>} : vector<2x32xf32>, vector<32x512xf32>, vector<2x512xf32> -> vector<2x512xf32>
    %c0_21 = arith.constant 0 : index
    %c0_22 = arith.constant 0 : index
    %49 = vector.load %arg8[%c0_21, %c0_22] : memref<2x32xf32, #tpu.memory_space<vmem>>, vector<2x32xf32>
    %cst_23 = arith.constant dense<0.000000e+00> : vector<2x512xf32>
    %50 = tpu.matmul %49, %46, %cst_23 {dimension_numbers = #tpu.dot_dimension_numbers<[1], [0], [0], [1], [0, 0, 1, 1], [], []>} : vector<2x32xf32>, vector<32x512xf32>, vector<2x512xf32> -> vector<2x512xf32>
    %c0_24 = arith.constant 0 : index
    %c0_25 = arith.constant 0 : index
    %51 = vector.load %arg9[%c0_24, %c0_25] : memref<2x32xf32, #tpu.memory_space<vmem>>, vector<2x32xf32>
    %cst_26 = arith.constant dense<0.000000e+00> : vector<2x512xf32>
    %52 = tpu.matmul %51, %46, %cst_26 {dimension_numbers = #tpu.dot_dimension_numbers<[1], [0], [0], [1], [0, 0, 1, 1], [], []>} : vector<2x32xf32>, vector<32x512xf32>, vector<2x512xf32> -> vector<2x512xf32>
    %c0_27 = arith.constant 0 : index
    %c0_28 = arith.constant 0 : index
    %53 = vector.load %arg12[%c0_27, %c0_28] : memref<2x1xf32, #tpu.memory_space<vmem>>, vector<2x1xf32>
    %54 = vector.broadcast %53 : vector<2x1xf32> to vector<2x512xf32>
    %55 = arith.addf %50, %54 : vector<2x512xf32>
    %c0_29 = arith.constant 0 : index
    %c0_30 = arith.constant 0 : index
    %56 = vector.load %arg10[%c0_29, %c0_30] : memref<2x1xf32, #tpu.memory_space<vmem>>, vector<2x1xf32>
    %c16_i32_31 = arith.constant 16 : i32
    %57 = tpu.dynamic_rotate %48 by %c16_i32_31 dim 1 : vector<2x512xf32>, i32 -> vector<2x512xf32>
    %58 = vector.shape_cast %18 : vector<1x512xi1> to vector<1x512xi1>
    %59 = vector.broadcast %58 : vector<1x512xi1> to vector<2x512xi1>
    %60 = vector.shape_cast %56 : vector<2x1xf32> to vector<2x1xf32>
    %61 = vector.broadcast %60 : vector<2x1xf32> to vector<2x512xf32>
    %62 = arith.select %59, %61, %57 : vector<2x512xi1>, vector<2x512xf32>
    %63 = arith.addf %55, %62 : vector<2x512xf32>
    %c0_32 = arith.constant 0 : index
    %c0_33 = arith.constant 0 : index
    %64 = vector.load %arg11[%c0_32, %c0_33] : memref<2x1xf32, #tpu.memory_space<vmem>>, vector<2x1xf32>
    %c496_i32_34 = arith.constant 496 : i32
    %65 = tpu.dynamic_rotate %52 by %c496_i32_34 dim 1 : vector<2x512xf32>, i32 -> vector<2x512xf32>
    %66 = vector.shape_cast %20 : vector<1x512xi1> to vector<1x512xi1>
    %67 = vector.broadcast %66 : vector<1x512xi1> to vector<2x512xi1>
    %68 = vector.shape_cast %64 : vector<2x1xf32> to vector<2x1xf32>
    %69 = vector.broadcast %68 : vector<2x1xf32> to vector<2x512xf32>
    %70 = arith.select %67, %69, %65 : vector<2x512xi1>, vector<2x512xf32>
    %71 = arith.addf %63, %70 : vector<2x512xf32>
    %c0_35 = arith.constant 0 : index
    %c0_36 = arith.constant 0 : index
    %72 = vector.load %arg2[%c0_35, %c0_36] : memref<2x512xf32, #tpu.memory_space<vmem>>, vector<2x512xf32>
    %73 = arith.addf %72, %71 : vector<2x512xf32>
    %c0_37 = arith.constant 0 : index
    %c0_38 = arith.constant 0 : index
    %74 = vector.load %arg13[%c0_37, %c0_38] : memref<2x512xf32, #tpu.memory_space<vmem>>, vector<2x512xf32>
    tpu.vector_store %arg13[%c0_37, %c0_38], %73 {strides = array<i32>} : memref<2x512xf32, #tpu.memory_space<vmem>>, vector<2x512xf32>,
    return
  }
  func.func @transform_0(%arg0: i32) -> (i32, i32) {
    %c0_i32 = arith.constant 0 : i32
    %c0_i32_0 = arith.constant 0 : i32
    return %c0_i32, %arg0 : i32, i32
  }
  func.func @transform_1(%arg0: i32) -> (i32, i32) {
    %c0_i32 = arith.constant 0 : i32
    %c0_i32_0 = arith.constant 0 : i32
    return %c0_i32, %arg0 : i32, i32
  }
  func.func @transform_2(%arg0: i32) -> (i32, i32) {
    %c0_i32 = arith.constant 0 : i32
    %c0_i32_0 = arith.constant 0 : i32
    %c0_i32_1 = arith.constant 0 : i32
    return %c0_i32, %c0_i32_0 : i32, i32
  }
  func.func @transform_3(%arg0: i32) -> (i32, i32) {
    %c0_i32 = arith.constant 0 : i32
    %c0_i32_0 = arith.constant 0 : i32
    %c0_i32_1 = arith.constant 0 : i32
    return %c0_i32, %c0_i32_0 : i32, i32
  }
  func.func @transform_4(%arg0: i32) -> (i32, i32) {
    %c0_i32 = arith.constant 0 : i32
    %c0_i32_0 = arith.constant 0 : i32
    %c0_i32_1 = arith.constant 0 : i32
    return %c0_i32, %c0_i32_0 : i32, i32
  }
  func.func @transform_5(%arg0: i32) -> (i32, i32) {
    %c0_i32 = arith.constant 0 : i32
    %c0_i32_0 = arith.constant 0 : i32
    %c0_i32_1 = arith.constant 0 : i32
    return %c0_i32, %c0_i32_0 : i32, i32
  }
  func.func @transform_6(%arg0: i32) -> (i32, i32) {
    %c0_i32 = arith.constant 0 : i32
    %c0_i32_0 = arith.constant 0 : i32
    %c0_i32_1 = arith.constant 0 : i32
    return %c0_i32, %c0_i32_0 : i32, i32
  }
  func.func @transform_7(%arg0: i32) -> (i32, i32) {
    %c0_i32 = arith.constant 0 : i32
    %c0_i32_0 = arith.constant 0 : i32
    %c0_i32_1 = arith.constant 0 : i32
    return %c0_i32, %c0_i32_0 : i32, i32
  }
  func.func @transform_8(%arg0: i32) -> (i32, i32) {
    %c0_i32 = arith.constant 0 : i32
    %c0_i32_0 = arith.constant 0 : i32
    %c0_i32_1 = arith.constant 0 : i32
    return %c0_i32, %c0_i32_0 : i32, i32
  }
  func.func @transform_9(%arg0: i32) -> (i32, i32) {
    %c0_i32 = arith.constant 0 : i32
    %c0_i32_0 = arith.constant 0 : i32
    %c0_i32_1 = arith.constant 0 : i32
    return %c0_i32, %c0_i32_0 : i32, i32
  }
  func.func @transform_10(%arg0: i32) -> (i32, i32) {
    %c0_i32 = arith.constant 0 : i32
    %c0_i32_0 = arith.constant 0 : i32
    %c0_i32_1 = arith.constant 0 : i32
    return %c0_i32, %c0_i32_0 : i32, i32
  }
  func.func @transform_11(%arg0: i32) -> (i32, i32) {
    %c0_i32 = arith.constant 0 : i32
    %c0_i32_0 = arith.constant 0 : i32
    %c0_i32_1 = arith.constant 0 : i32
    return %c0_i32, %c0_i32_0 : i32, i32
  }
  func.func @transform_12(%arg0: i32) -> (i32, i32) {
    %c0_i32 = arith.constant 0 : i32
    %c0_i32_0 = arith.constant 0 : i32
    return %c0_i32, %arg0 : i32, i32
  }
}

</mosaic_0001>

<llo_original>
// kernel: affine_coupling_forward.1
$region0: #{affine_coupling_forward.1}
  #allocation0 [shape = 'u32[]', space=smem, size = 0x4, offset = 0x4, fixed_abs, tag = 'smem constant byte address 0x4 - core index']
  #allocation1 [shape = 'u32[72,128]{1,0:T(1,128)}', space=vmem, size = 0x9000, scoped, tag = 'internal scratch']
  %s0 = inlined_call_operand.vmem [shape: f32[2,512], index: 0, kind: input, shape index: {}]
  %s1 = inlined_call_operand.vmem [shape: f32[2,512], index: 1, kind: input, shape index: {}]
  %s2 = inlined_call_operand.vmem [shape: f32[32,6], index: 2, kind: input, shape index: {}]
  %s3 = inlined_call_operand.vmem [shape: f32[32,1], index: 3, kind: input, shape index: {}]
  %s4 = inlined_call_operand.vmem [shape: f32[32,32], index: 4, kind: input, shape index: {}]
  %s5 = inlined_call_operand.vmem [shape: f32[32,1], index: 5, kind: input, shape index: {}]
  %s6 = inlined_call_operand.vmem [shape: f32[2,32], index: 6, kind: input, shape index: {}]
  %s7 = inlined_call_operand.vmem [shape: f32[2,32], index: 7, kind: input, shape index: {}]
  %s8 = inlined_call_operand.vmem [shape: f32[2,32], index: 8, kind: input, shape index: {}]
  %s9 = inlined_call_operand.vmem [shape: f32[2,1], index: 9, kind: input, shape index: {}]
  %s10 = inlined_call_operand.vmem [shape: f32[2,1], index: 10, kind: input, shape index: {}]
  %s11 = inlined_call_operand.vmem [shape: f32[2,1], index: 11, kind: input, shape index: {}]
  %s12 = inlined_call_operand.vmem [shape: f32[2,512], index: 12, kind: output, shape index: {}]
  %s13 = sld [smem:[#allocation0]]
  $region58: #{affine_coupling_forward.1} parent=0
    _
  %s15 = ssub.s32 1, %s13
  %s16 = scalar_select 0, %s15, %s13
  // Predicated region
  $region2: #{affine_coupling_forward.1} parent=0 // pred_check
    _
  $region3: #{affine_coupling_forward.1} parent=0 // pred_check_branch
    %18 = sbr.rel (0) target = $region5
  $region4: #{affine_coupling_forward.1} parent=0 // pred_region
    _
  $region5: #{affine_coupling_forward.1} parent=0 // pred_fallthru
    _
  // Predicated region
  $region6: #{affine_coupling_forward.1} parent=0 // pred_check
    _
  $region7: #{affine_coupling_forward.1} parent=0 // pred_check_branch
    %20 = sbr.rel (0) target = $region9
  $region8: #{affine_coupling_forward.1} parent=0 // pred_region
    _
  $region9: #{affine_coupling_forward.1} parent=0 // pred_fallthru
    _
  // Predicated region
  $region10: #{affine_coupling_forward.1} parent=0 // pred_check
    _
  $region11: #{affine_coupling_forward.1} parent=0 // pred_check_branch
    %22 = sbr.rel (0) target = $region13
  $region12: #{affine_coupling_forward.1} parent=0 // pred_region
    _
  $region13: #{affine_coupling_forward.1} parent=0 // pred_fallthru
    _
  // Predicated region
  $region14: #{affine_coupling_forward.1} parent=0 // pred_check
    _
  $region15: #{affine_coupling_forward.1} parent=0 // pred_check_branch
    %24 = sbr.rel (0) target = $region17
  $region16: #{affine_coupling_forward.1} parent=0 // pred_region
    _
  $region17: #{affine_coupling_forward.1} parent=0 // pred_fallthru
    _
  // Predicated region
  $region18: #{affine_coupling_forward.1} parent=0 // pred_check
    _
  $region19: #{affine_coupling_forward.1} parent=0 // pred_check_branch
    %26 = sbr.rel (0) target = $region21
  $region20: #{affine_coupling_forward.1} parent=0 // pred_region
    _
  $region21: #{affine_coupling_forward.1} parent=0 // pred_fallthru
    _
  // Predicated region
  $region22: #{affine_coupling_forward.1} parent=0 // pred_check
    _
  $region23: #{affine_coupling_forward.1} parent=0 // pred_check_branch
    %28 = sbr.rel (0) target = $region25
  $region24: #{affine_coupling_forward.1} parent=0 // pred_region
    _
  $region25: #{affine_coupling_forward.1} parent=0 // pred_fallthru
    _
  // Predicated region
  $region26: #{affine_coupling_forward.1} parent=0 // pred_check
    _
  $region27: #{affine_coupling_forward.1} parent=0 // pred_check_branch
    %30 = sbr.rel (0) target = $region29
  $region28: #{affine_coupling_forward.1} parent=0 // pred_region
    _
  $region29: #{affine_coupling_forward.1} parent=0 // pred_fallthru
    _
  // Predicated region
  $region30: #{affine_coupling_forward.1} parent=0 // pred_check
    _
  $region31: #{affine_coupling_forward.1} parent=0 // pred_check_branch
    %32 = sbr.rel (0) target = $region33
  $region32: #{affine_coupling_forward.1} parent=0 // pred_region
    _
  $region33: #{affine_coupling_forward.1} parent=0 // pred_fallthru
    _
  // Predicated region
  $region34: #{affine_coupling_forward.1} parent=0 // pred_check
    _
  $region35: #{affine_coupling_forward.1} parent=0 // pred_check_branch
    %34 = sbr.rel (0) target = $region37
  $region36: #{affine_coupling_forward.1} parent=0 // pred_region
    _
  $region37: #{affine_coupling_forward.1} parent=0 // pred_fallthru
    _
  // Predicated region
  $region38: #{affine_coupling_forward.1} parent=0 // pred_check
    _
  $region39: #{affine_coupling_forward.1} parent=0 // pred_check_branch
    %36 = sbr.rel (0) target = $region41
  $region40: #{affine_coupling_forward.1} parent=0 // pred_region
    _
  $region41: #{affine_coupling_forward.1} parent=0 // pred_fallthru
    _
  // Predicated region
  $region42: #{affine_coupling_forward.1} parent=0 // pred_check
    _
  $region43: #{affine_coupling_forward.1} parent=0 // pred_check_branch
    %38 = sbr.rel (0) target = $region45
  $region44: #{affine_coupling_forward.1} parent=0 // pred_region
    _
  $region45: #{affine_coupling_forward.1} parent=0 // pred_fallthru
    _
  // Predicated region
  $region46: #{affine_coupling_forward.1} parent=0 // pred_check
    _
  $region47: #{affine_coupling_forward.1} parent=0 // pred_check_branch
    %40 = sbr.rel (0) target = $region49
  $region48: #{affine_coupling_forward.1} parent=0 // pred_region
    _
  $region49: #{affine_coupling_forward.1} parent=0 // pred_fallthru
    _
  %v41 = vlaneseq
  %v42 = vand.u32 %v41, 127
  %v43 = vadd.s32 %v42, 128
  %v44 = vadd.s32 %v42, 256
  %v45 = vadd.s32 %v42, 384
  %vm46 = vcmp.lt.s32.totalorder %v42, 0
  %v47 = vsub.s32 0, %v42
  %v48 = vsel %vm46, %v47, %v42
  %v49 = vshrl.u32 %v48, 8
  %v50 = vand.u32 %v48, 255
  %v51 = vsub.s32 0, %v50
  %v52 = vsel %vm46, %v51, %v50
  %vm53 = vcmp.lt.s32.totalorder %v43, 0
  %v54 = vsub.s32 0, %v43
  %v55 = vsel %vm53, %v54, %v43
  %v56 = vshrl.u32 %v55, 8
  %v57 = vand.u32 %v55, 255
  %v58 = vsub.s32 0, %v57
  %v59 = vsel %vm53, %v58, %v57
  %vm60 = vcmp.lt.s32.totalorder %v44, 0
  %v61 = vsub.s32 0, %v44
  %v62 = vsel %vm60, %v61, %v44
  %v63 = vshrl.u32 %v62, 8
  %v64 = vand.u32 %v62, 255
  %v65 = vsub.s32 0, %v64
  %v66 = vsel %vm60, %v65, %v64
  %vm67 = vcmp.lt.s32.totalorder %v45, 0
  %v68 = vsub.s32 0, %v45
  %v69 = vsel %vm67, %v68, %v45
  %v70 = vshrl.u32 %v69, 8
  %v71 = vand.u32 %v69, 255
  %v72 = vsub.s32 0, %v71
  %v73 = vsel %vm67, %v72, %v71
  %vm74 = vcmp.ne.s32.totalorder %v52, 0
  %vm75 = vcmp.ne.s32.totalorder %v59, 0
  %vm76 = vcmp.ne.s32.totalorder %v66, 0
  %vm77 = vcmp.ne.s32.totalorder %v73, 0
  %vm78 = vcmp.lt.s32.totalorder %v52, 0
  %vm79 = vcmp.lt.s32.totalorder %v59, 0
  %vm80 = vcmp.lt.s32.totalorder %v66, 0
  %vm81 = vcmp.lt.s32.totalorder %v73, 0
  %vm82 = vmand %vm78, %vm74
  %vm83 = vmand %vm79, %vm75
  %vm84 = vmand %vm80, %vm76
  %vm85 = vmand %vm81, %vm77
  %v86 = vadd.s32 %v52, 256
  %v87 = vadd.s32 %v59, 256
  %v88 = vadd.s32 %v66, 256
  %v89 = vadd.s32 %v73, 256
  %v90 = vsel %vm82, %v86, %v52
  %v91 = vsel %vm83, %v87, %v59
  %v92 = vsel %vm84, %v88, %v66
  %v93 = vsel %vm85, %v89, %v73
  %vm94 = vcmp.lt.s32.totalorder %v90, 16
  %vm95 = vcmp.lt.s32.totalorder %v91, 16
  %vm96 = vcmp.lt.s32.totalorder %v92, 16
  %vm97 = vcmp.lt.s32.totalorder %v93, 16
  %vm98 = vcmp.ge.s32.totalorder %v90, 240
  %vm99 = vcmp.ge.s32.totalorder %v91, 240
  %vm100 = vcmp.ge.s32.totalorder %v92, 240
  %vm101 = vcmp.ge.s32.totalorder %v93, 240
  %v102 = vld [vmem:[%s0] sm:$0xff]
  %104 = vst [vmem:[#allocation1] ss:$4 sm:$0xff] %v102
  %v105 = vld.sshfl [vmem:[#allocation1] sm:$0xff pattern:$0x73625140]
  %v106 = vld.sshfl [vmem:[#allocation1 + $0x8] sm:$0xff pattern:$0x73625140]
  %v107 = vld.sshfl [vmem:[#allocation1 + $0x10] sm:$0xff pattern:$0x73625140]
  %v108 = vld.sshfl [vmem:[#allocation1 + $0x18] sm:$0xff pattern:$0x73625140]
  %113 = vrot.lane.b32.xlu0 %v105, 16
  %v114 = vpop.permute.xlu0 %113
  %115 = vrot.lane.b32.xlu0 %v106, 16
  %v116 = vpop.permute.xlu0 %115
  %117 = vrot.lane.b32.xlu0 %v107, 16
  %v118 = vpop.permute.xlu0 %117
  %119 = vrot.lane.b32.xlu0 %v108, 16
  %v120 = vpop.permute.xlu0 %119
  %vm121 = vcmp.lt.s32.totalorder %v42, 16
  %v122 = vsel %vm121, %v118, %v120
  %v123 = vsel %vm121, %v116, %v118
  %v124 = vsel %vm121, %v114, %v116
  %v125 = vsel %vm121, %v120, %v114
  %v126 = vsel %vm94, 1, 0
  %v127 = vsel %vm95, 1, 0
  %v128 = vsel %vm96, 1, 0
  %v129 = vsel %vm97, 1, 0
  %vm130 = vcmp.eq.s32.totalorder %v126, 1
  %vm131 = vcmp.eq.s32.totalorder %v127, 1
  %vm132 = vcmp.eq.s32.totalorder %v128, 1
  %vm133 = vcmp.eq.s32.totalorder %v129, 1
  %v134 = vsel %vm130, 0.0, %v125
  %v135 = vsel %vm131, 0.0, %v124
  %v136 = vsel %vm132, 0.0, %v123
  %v137 = vsel %vm133, 0.0, %v122
  %138 = vst [vmem:[#allocation1] ss:$4 sm:$0xff] %v102
  %v139 = vld.sshfl [vmem:[#allocation1] sm:$0xff pattern:$0x73625140]
  %v140 = vld.sshfl [vmem:[#allocation1 + $0x8] sm:$0xff pattern:$0x73625140]
  %v141 = vld.sshfl [vmem:[#allocation1 + $0x10] sm:$0xff pattern:$0x73625140]
  %v142 = vld.sshfl [vmem:[#allocation1 + $0x18] sm:$0xff pattern:$0x73625140]
  %147 = vrot.lane.b32.xlu0 %v139, 112
  %v148 = vpop.permute.xlu0 %147
  %149 = vrot.lane.b32.xlu0 %v140, 112
  %v150 = vpop.permute.xlu0 %149
  %151 = vrot.lane.b32.xlu0 %v141, 112
  %v152 = vpop.permute.xlu0 %151
  %153 = vrot.lane.b32.xlu0 %v142, 112
  %v154 = vpop.permute.xlu0 %153
  %vm155 = vcmp.lt.s32.totalorder %v42, 112
  %v156 = vsel %vm155, %v152, %v154
  %v157 = vsel %vm155, %v150, %v152
  %v158 = vsel %vm155, %v148, %v150
  %v159 = vsel %vm155, %v154, %v148
  %v160 = vsel %vm98, 1, 0
  %v161 = vsel %vm99, 1, 0
  %v162 = vsel %vm100, 1, 0
  %v163 = vsel %vm101, 1, 0
  %vm164 = vcmp.eq.s32.totalorder %v160, 1
  %vm165 = vcmp.eq.s32.totalorder %v161, 1
  %vm166 = vcmp.eq.s32.totalorder %v162, 1
  %vm167 = vcmp.eq.s32.totalorder %v163, 1
  %v168 = vsel %vm164, 0.0, %v158
  %v169 = vsel %vm165, 0.0, %v157
  %v170 = vsel %vm166, 0.0, %v156
  %v171 = vsel %vm167, 0.0, %v159
  %s172 = scalar_lea.vmem [#allocation1], 1
  %173 = vst [vmem:[%s172] ss:$4 sm:$0xff] %v102
  %v174 = vld.sshfl [vmem:[#allocation1] sm:$0xff pattern:$0x73625140]
  %v175 = vld.sshfl [vmem:[#allocation1 + $0x8] sm:$0xff pattern:$0x73625140]
  %v176 = vld.sshfl [vmem:[#allocation1 + $0x10] sm:$0xff pattern:$0x73625140]
  %v177 = vld.sshfl [vmem:[#allocation1 + $0x18] sm:$0xff pattern:$0x73625140]
  %v186 = vrot.slane %v168, 4
  %v187 = vrot.slane %v169, 4
  %v188 = vrot.slane %v170, 4
  %v189 = vrot.slane %v171, 4
  %vm194 = vcmask 1041408
  %v195 = vsel %vm194, %v134, %v174
  %v196 = vsel %vm194, %v135, %v175
  %v197 = vsel %vm194, %v136, %v176
  %v198 = vsel %vm194, %v137, %v177
  %vm199 = vcmask 1043456
  %v200 = vsel %vm199, %v195, %v186
  %v201 = vsel %vm199, %v196, %v187
  %v202 = vsel %vm199, %v197, %v188
  %v203 = vsel %vm199, %v198, %v189
  %v204 = vld [vmem:[%s2] sm:$0xff]
  %v205 = vld [vmem:[%s2 + $0x8] sm:$0xff]
  %v206 = vld [vmem:[%s2 + $0x10] sm:$0xff]
  %v207 = vld [vmem:[%s2 + $0x18] sm:$0xff]
  %v208 = vld [vmem:[%s3] sm:$0xff]
  %v209 = vld [vmem:[%s3 + $0x8] sm:$0xff]
  %v210 = vld [vmem:[%s3 + $0x10] sm:$0xff]
  %v211 = vld [vmem:[%s3 + $0x18] sm:$0xff]
  %213 = vset.pattern.permute.xlu0 0
  %214 = vperm.xlu0 %213, %v208
  %v215 = vpop.permute.xlu0 %214
  %218 = vset.pattern.permute.xlu0 0
  %219 = vperm.xlu0 %218, %v209
  %v220 = vpop.permute.xlu0 %219
  %223 = vset.pattern.permute.xlu0 0
  %224 = vperm.xlu0 %223, %v210
  %v225 = vpop.permute.xlu0 %224
  %228 = vset.pattern.permute.xlu0 0
  %229 = vperm.xlu0 %228, %v211
  %v230 = vpop.permute.xlu0 %229
  %vm232 = vcmask 48128
  %v234 = vsel %vm232, %v204, 0
  %v237 = vsel %vm232, %v205, 0
  %v240 = vsel %vm232, %v206, 0
  %v243 = vsel %vm232, %v207, 0
  %vm245 = vcmask 1045504
  %v247 = vsel %vm245, %v200, 0
  %v250 = vsel %vm245, %v201, 0
  %v253 = vsel %vm245, %v202, 0
  %v256 = vsel %vm245, %v203, 0
  %258 = vmatpush.msra.mxu0 0.0
  %259 = vmatpush.msra.mxu0 0.0
  %260 = vmatpush.msra.mxu0 0.0
  %261 = vmatpush.msra.mxu0 0.0
  %262 = vmatpush.msra.mxu0 0.0
  %263 = vmatpush.msra.mxu0 0.0
  %264 = vmatpush.msra.mxu0 0.0
  %265 = vmatpush.msra.mxu0 0.0
  %266 = vmatpush.msra.mxu0 0.0
  %267 = vmatpush.msra.mxu0 0.0
  %268 = vmatpush.msra.mxu0 0.0
  %269 = vmatpush.msra.mxu0 0.0
  %270 = vmatpush.msra.mxu0 0.0
  %271 = vmatpush.msra.mxu0 0.0
  %272 = vmatpush.msra.mxu0 0.0
  %273 = vmatpush.msra.mxu0 %v247
  %274 = vmatmul.f32.gmra.mxu0 %v234
  %v275 = vpop.f32.mrf.mxu0
  %v276 = vadd.f32 %v215, %v275
  %277 = vmatmul.f32.gmra.mxu0 %v237
  %v278 = vpop.f32.mrf.mxu0
  %v279 = vadd.f32 %v220, %v278
  %280 = vmatmul.f32.gmra.mxu0 %v240
  %v281 = vpop.f32.mrf.mxu0
  %v282 = vadd.f32 %v225, %v281
  %283 = vmatmul.f32.gmra.mxu0 %v243
  %v284 = vpop.f32.mrf.mxu0
  %v285 = vadd.f32 %v230, %v284
  %286 = vdwg.mxu0
  %287 = vmatpush.msra.mxu0 0.0
  %288 = vmatpush.msra.mxu0 0.0
  %289 = vmatpush.msra.mxu0 0.0
  %290 = vmatpush.msra.mxu0 0.0
  %291 = vmatpush.msra.mxu0 0.0
  %292 = vmatpush.msra.mxu0 0.0
  %293 = vmatpush.msra.mxu0 0.0
  %294 = vmatpush.msra.mxu0 0.0
  %295 = vmatpush.msra.mxu0 0.0
  %296 = vmatpush.msra.mxu0 0.0
  %297 = vmatpush.msra.mxu0 0.0
  %298 = vmatpush.msra.mxu0 0.0
  %299 = vmatpush.msra.mxu0 0.0
  %300 = vmatpush.msra.mxu0 0.0
  %301 = vmatpush.msra.mxu0 0.0
  %302 = vmatpush.msra.mxu0 %v250
  %303 = vmatmul.f32.gmra.mxu0 %v234
  %v304 = vpop.f32.mrf.mxu0
  %v305 = vadd.f32 %v215, %v304
  %306 = vmatmul.f32.gmra.mxu0 %v237
  %v307 = vpop.f32.mrf.mxu0
  %v308 = vadd.f32 %v220, %v307
  %309 = vmatmul.f32.gmra.mxu0 %v240
  %v310 = vpop.f32.mrf.mxu0
  %v311 = vadd.f32 %v225, %v310
  %312 = vmatmul.f32.gmra.mxu0 %v243
  %v313 = vpop.f32.mrf.mxu0
  %v314 = vadd.f32 %v230, %v313
  %315 = vdwg.mxu0
  %316 = vmatpush.msra.mxu0 0.0
  %317 = vmatpush.msra.mxu0 0.0
  %318 = vmatpush.msra.mxu0 0.0
  %319 = vmatpush.msra.mxu0 0.0
  %320 = vmatpush.msra.mxu0 0.0
  %321 = vmatpush.msra.mxu0 0.0
  %322 = vmatpush.msra.mxu0 0.0
  %323 = vmatpush.msra.mxu0 0.0
  %324 = vmatpush.msra.mxu0 0.0
  %325 = vmatpush.msra.mxu0 0.0
  %326 = vmatpush.msra.mxu0 0.0
  %327 = vmatpush.msra.mxu0 0.0
  %328 = vmatpush.msra.mxu0 0.0
  %329 = vmatpush.msra.mxu0 0.0
  %330 = vmatpush.msra.mxu0 0.0
  %331 = vmatpush.msra.mxu0 %v253
  %332 = vmatmul.f32.gmra.mxu0 %v234
  %v333 = vpop.f32.mrf.mxu0
  %v334 = vadd.f32 %v215, %v333
  %335 = vmatmul.f32.gmra.mxu0 %v237
  %v336 = vpop.f32.mrf.mxu0
  %v337 = vadd.f32 %v220, %v336
  %338 = vmatmul.f32.gmra.mxu0 %v240
  %v339 = vpop.f32.mrf.mxu0
  %v340 = vadd.f32 %v225, %v339
  %341 = vmatmul.f32.gmra.mxu0 %v243
  %v342 = vpop.f32.mrf.mxu0
  %v343 = vadd.f32 %v230, %v342
  %344 = vdwg.mxu0
  %345 = vmatpush.msra.mxu0 0.0
  %346 = vmatpush.msra.mxu0 0.0
  %347 = vmatpush.msra.mxu0 0.0
  %348 = vmatpush.msra.mxu0 0.0
  %349 = vmatpush.msra.mxu0 0.0
  %350 = vmatpush.msra.mxu0 0.0
  %351 = vmatpush.msra.mxu0 0.0
  %352 = vmatpush.msra.mxu0 0.0
  %353 = vmatpush.msra.mxu0 0.0
  %354 = vmatpush.msra.mxu0 0.0
  %355 = vmatpush.msra.mxu0 0.0
  %356 = vmatpush.msra.mxu0 0.0
  %357 = vmatpush.msra.mxu0 0.0
  %358 = vmatpush.msra.mxu0 0.0
  %359 = vmatpush.msra.mxu0 0.0
  %360 = vmatpush.msra.mxu0 %v256
  %361 = vmatmul.f32.gmra.mxu0 %v234
  %v362 = vpop.f32.mrf.mxu0
  %v363 = vadd.f32 %v215, %v362
  %364 = vmatmul.f32.gmra.mxu0 %v237
  %v365 = vpop.f32.mrf.mxu0
  %v366 = vadd.f32 %v220, %v365
  %367 = vmatmul.f32.gmra.mxu0 %v240
  %v368 = vpop.f32.mrf.mxu0
  %v369 = vadd.f32 %v225, %v368
  %370 = vmatmul.f32.gmra.mxu0 %v243
  %v371 = vpop.f32.mrf.mxu0
  %v372 = vadd.f32 %v230, %v371
  %373 = vdwg.mxu0
  %v374 = vmax.f32 %v276, 0.0
  %v375 = vmax.f32 %v305, 0.0
  %v376 = vmax.f32 %v334, 0.0
  %v377 = vmax.f32 %v363, 0.0
  %v378 = vmax.f32 %v279, 0.0
  %v379 = vmax.f32 %v308, 0.0
  %v380 = vmax.f32 %v337, 0.0
  %v381 = vmax.f32 %v366, 0.0
  %v382 = vmax.f32 %v282, 0.0
  %v383 = vmax.f32 %v311, 0.0
  %v384 = vmax.f32 %v340, 0.0
  %v385 = vmax.f32 %v369, 0.0
  %v386 = vmax.f32 %v285, 0.0
  %v387 = vmax.f32 %v314, 0.0
  %v388 = vmax.f32 %v343, 0.0
  %v389 = vmax.f32 %v372, 0.0
  %v390 = vld [vmem:[%s4] sm:$0xff]
  %v391 = vld [vmem:[%s4 + $0x8] sm:$0xff]
  %v392 = vld [vmem:[%s4 + $0x10] sm:$0xff]
  %v393 = vld [vmem:[%s4 + $0x18] sm:$0xff]
  %v394 = vld [vmem:[%s5] sm:$0xff]
  %v395 = vld [vmem:[%s5 + $0x8] sm:$0xff]
  %v396 = vld [vmem:[%s5 + $0x10] sm:$0xff]
  %v397 = vld [vmem:[%s5 + $0x18] sm:$0xff]
  %399 = vset.pattern.permute.xlu0 0
  %400 = vperm.xlu0 %399, %v394
  %v401 = vpop.permute.xlu0 %400
  %404 = vset.pattern.permute.xlu0 0
  %405 = vperm.xlu0 %404, %v395
  %v406 = vpop.permute.xlu0 %405
  %409 = vset.pattern.permute.xlu0 0
  %410 = vperm.xlu0 %409, %v396
  %v411 = vpop.permute.xlu0 %410
  %414 = vset.pattern.permute.xlu0 0
  %415 = vperm.xlu0 %414, %v397
  %v416 = vpop.permute.xlu0 %415
  %vm418 = vcmask 261120
  %v420 = vsel %vm418, %v390, 0
  %v423 = vsel %vm418, %v391, 0
  %v426 = vsel %vm418, %v392, 0
  %v429 = vsel %vm418, %v393, 0
  %431 = vmatpush.msra.mxu0 0.0
  %432 = vmatpush.msra.mxu0 0.0
  %433 = vmatpush.msra.mxu0 0.0
  %434 = vmatpush.msra.mxu0 0.0
  %435 = vmatpush.msra.mxu0 0.0
  %436 = vmatpush.msra.mxu0 0.0
  %437 = vmatpush.msra.mxu0 0.0
  %438 = vmatpush.msra.mxu0 0.0
  %439 = vmatpush.msra.mxu0 0.0
  %440 = vmatpush.msra.mxu0 0.0
  %441 = vmatpush.msra.mxu0 0.0
  %442 = vmatpush.msra.mxu0 0.0
  %443 = vmatpush.msra.mxu0 %v386
  %444 = vmatpush.msra.mxu0 %v382
  %445 = vmatpush.msra.mxu0 %v378
  %446 = vmatpush.msra.mxu0 %v374
  %447 = vmatmul.f32.gmra.mxu0 %v420
  %v448 = vpop.f32.mrf.mxu0
  %v449 = vadd.f32 %v401, %v448
  %450 = vmatmul.f32.gmra.mxu0 %v423
  %v451 = vpop.f32.mrf.mxu0
  %v452 = vadd.f32 %v406, %v451
  %453 = vmatmul.f32.gmra.mxu0 %v426
  %v454 = vpop.f32.mrf.mxu0
  %v455 = vadd.f32 %v411, %v454
  %456 = vmatmul.f32.gmra.mxu0 %v429
  %v457 = vpop.f32.mrf.mxu0
  %v458 = vadd.f32 %v416, %v457
  %459 = vdwg.mxu0
  %460 = vmatpush.msra.mxu0 0.0
  %461 = vmatpush.msra.mxu0 0.0
  %462 = vmatpush.msra.mxu0 0.0
  %463 = vmatpush.msra.mxu0 0.0
  %464 = vmatpush.msra.mxu0 0.0
  %465 = vmatpush.msra.mxu0 0.0
  %466 = vmatpush.msra.mxu0 0.0
  %467 = vmatpush.msra.mxu0 0.0
  %468 = vmatpush.msra.mxu0 0.0
  %469 = vmatpush.msra.mxu0 0.0
  %470 = vmatpush.msra.mxu0 0.0
  %471 = vmatpush.msra.mxu0 0.0
  %472 = vmatpush.msra.mxu0 %v387
  %473 = vmatpush.msra.mxu0 %v383
  %474 = vmatpush.msra.mxu0 %v379
  %475 = vmatpush.msra.mxu0 %v375
  %476 = vmatmul.f32.gmra.mxu0 %v420
  %v477 = vpop.f32.mrf.mxu0
  %v478 = vadd.f32 %v401, %v477
  %479 = vmatmul.f32.gmra.mxu0 %v423
  %v480 = vpop.f32.mrf.mxu0
  %v481 = vadd.f32 %v406, %v480
  %482 = vmatmul.f32.gmra.mxu0 %v426
  %v483 = vpop.f32.mrf.mxu0
  %v484 = vadd.f32 %v411, %v483
  %485 = vmatmul.f32.gmra.mxu0 %v429
  %v486 = vpop.f32.mrf.mxu0
  %v487 = vadd.f32 %v416, %v486
  %488 = vdwg.mxu0
  %489 = vmatpush.msra.mxu0 0.0
  %490 = vmatpush.msra.mxu0 0.0
  %491 = vmatpush.msra.mxu0 0.0
  %492 = vmatpush.msra.mxu0 0.0
  %493 = vmatpush.msra.mxu0 0.0
  %494 = vmatpush.msra.mxu0 0.0
  %495 = vmatpush.msra.mxu0 0.0
  %496 = vmatpush.msra.mxu0 0.0
  %497 = vmatpush.msra.mxu0 0.0
  %498 = vmatpush.msra.mxu0 0.0
  %499 = vmatpush.msra.mxu0 0.0
  %500 = vmatpush.msra.mxu0 0.0
  %501 = vmatpush.msra.mxu0 %v388
  %502 = vmatpush.msra.mxu0 %v384
  %503 = vmatpush.msra.mxu0 %v380
  %504 = vmatpush.msra.mxu0 %v376
  %505 = vmatmul.f32.gmra.mxu0 %v420
  %v506 = vpop.f32.mrf.mxu0
  %v507 = vadd.f32 %v401, %v506
  %508 = vmatmul.f32.gmra.mxu0 %v423
  %v509 = vpop.f32.mrf.mxu0
  %v510 = vadd.f32 %v406, %v509
  %511 = vmatmul.f32.gmra.mxu0 %v426
  %v512 = vpop.f32.mrf.mxu0
  %v513 = vadd.f32 %v411, %v512
  %514 = vmatmul.f32.gmra.mxu0 %v429
  %v515 = vpop.f32.mrf.mxu0
  %v516 = vadd.f32 %v416, %v515
  %517 = vdwg.mxu0
  %518 = vmatpush.msra.mxu0 0.0
  %519 = vmatpush.msra.mxu0 0.0
  %520 = vmatpush.msra.mxu0 0.0
  %521 = vmatpush.msra.mxu0 0.0
  %522 = vmatpush.msra.mxu0 0.0
  %523 = vmatpush.msra.mxu0 0.0
  %524 = vmatpush.msra.mxu0 0.0
  %525 = vmatpush.msra.mxu0 0.0
  %526 = vmatpush.msra.mxu0 0.0
  %527 = vmatpush.msra.mxu0 0.0
  %528 = vmatpush.msra.mxu0 0.0
  %529 = vmatpush.msra.mxu0 0.0
  %530 = vmatpush.msra.mxu0 %v389
  %531 = vmatpush.msra.mxu0 %v385
  %532 = vmatpush.msra.mxu0 %v381
  %533 = vmatpush.msra.mxu0 %v377
  %534 = vmatmul.f32.gmra.mxu0 %v420
  %v535 = vpop.f32.mrf.mxu0
  %v536 = vadd.f32 %v401, %v535
  %537 = vmatmul.f32.gmra.mxu0 %v423
  %v538 = vpop.f32.mrf.mxu0
  %v539 = vadd.f32 %v406, %v538
  %540 = vmatmul.f32.gmra.mxu0 %v426
  %v541 = vpop.f32.mrf.mxu0
  %v542 = vadd.f32 %v411, %v541
  %543 = vmatmul.f32.gmra.mxu0 %v429
  %v544 = vpop.f32.mrf.mxu0
  %v545 = vadd.f32 %v416, %v544
  %546 = vdwg.mxu0
  %v547 = vmax.f32 %v449, 0.0
  %v548 = vmax.f32 %v478, 0.0
  %v549 = vmax.f32 %v507, 0.0
  %v550 = vmax.f32 %v536, 0.0
  %v551 = vmax.f32 %v452, 0.0
  %v552 = vmax.f32 %v481, 0.0
  %v553 = vmax.f32 %v510, 0.0
  %v554 = vmax.f32 %v539, 0.0
  %v555 = vmax.f32 %v455, 0.0
  %v556 = vmax.f32 %v484, 0.0
  %v557 = vmax.f32 %v513, 0.0
  %v558 = vmax.f32 %v542, 0.0
  %v559 = vmax.f32 %v458, 0.0
  %v560 = vmax.f32 %v487, 0.0
  %v561 = vmax.f32 %v516, 0.0
  %v562 = vmax.f32 %v545, 0.0
  %v563 = vld [vmem:[%s6] sm:$0x3]
  %v565 = vsel %vm418, %v563, 0
  %567 = vmatpush.msra.mxu0 0.0
  %568 = vmatpush.msra.mxu0 0.0
  %569 = vmatpush.msra.mxu0 0.0
  %570 = vmatpush.msra.mxu0 0.0
  %571 = vmatpush.msra.mxu0 0.0
  %572 = vmatpush.msra.mxu0 0.0
  %573 = vmatpush.msra.mxu0 0.0
  %574 = vmatpush.msra.mxu0 0.0
  %575 = vmatpush.msra.mxu0 0.0
  %576 = vmatpush.msra.mxu0 0.0
  %577 = vmatpush.msra.mxu0 0.0
  %578 = vmatpush.msra.mxu0 0.0
  %579 = vmatpush.msra.mxu0 %v559
  %580 = vmatpush.msra.mxu0 %v555
  %581 = vmatpush.msra.mxu0 %v551
  %582 = vmatpush.msra.mxu0 %v547
  %583 = vmatmul.f32.gmra.mxu0 %v565
  %v584 = vpop.f32.mrf.mxu0
  %v585 = vadd.f32 0.0, %v584
  %586 = vdwg.mxu0
  %587 = vmatpush.msra.mxu0 0.0
  %588 = vmatpush.msra.mxu0 0.0
  %589 = vmatpush.msra.mxu0 0.0
  %590 = vmatpush.msra.mxu0 0.0
  %591 = vmatpush.msra.mxu0 0.0
  %592 = vmatpush.msra.mxu0 0.0
  %593 = vmatpush.msra.mxu0 0.0
  %594 = vmatpush.msra.mxu0 0.0
  %595 = vmatpush.msra.mxu0 0.0
  %596 = vmatpush.msra.mxu0 0.0
  %597 = vmatpush.msra.mxu0 0.0
  %598 = vmatpush.msra.mxu0 0.0
  %599 = vmatpush.msra.mxu0 %v560
  %600 = vmatpush.msra.mxu0 %v556
  %601 = vmatpush.msra.mxu0 %v552
  %602 = vmatpush.msra.mxu0 %v548
  %603 = vmatmul.f32.gmra.mxu0 %v565
  %v604 = vpop.f32.mrf.mxu0
  %v605 = vadd.f32 0.0, %v604
  %606 = vdwg.mxu0
  %607 = vmatpush.msra.mxu0 0.0
  %608 = vmatpush.msra.mxu0 0.0
  %609 = vmatpush.msra.mxu0 0.0
  %610 = vmatpush.msra.mxu0 0.0
  %611 = vmatpush.msra.mxu0 0.0
  %612 = vmatpush.msra.mxu0 0.0
  %613 = vmatpush.msra.mxu0 0.0
  %614 = vmatpush.msra.mxu0 0.0
  %615 = vmatpush.msra.mxu0 0.0
  %616 = vmatpush.msra.mxu0 0.0
  %617 = vmatpush.msra.mxu0 0.0
  %618 = vmatpush.msra.mxu0 0.0
  %619 = vmatpush.msra.mxu0 %v561
  %620 = vmatpush.msra.mxu0 %v557
  %621 = vmatpush.msra.mxu0 %v553
  %622 = vmatpush.msra.mxu0 %v549
  %623 = vmatmul.f32.gmra.mxu0 %v565
  %v624 = vpop.f32.mrf.mxu0
  %v625 = vadd.f32 0.0, %v624
  %626 = vdwg.mxu0
  %627 = vmatpush.msra.mxu0 0.0
  %628 = vmatpush.msra.mxu0 0.0
  %629 = vmatpush.msra.mxu0 0.0
  %630 = vmatpush.msra.mxu0 0.0
  %631 = vmatpush.msra.mxu0 0.0
  %632 = vmatpush.msra.mxu0 0.0
  %633 = vmatpush.msra.mxu0 0.0
  %634 = vmatpush.msra.mxu0 0.0
  %635 = vmatpush.msra.mxu0 0.0
  %636 = vmatpush.msra.mxu0 0.0
  %637 = vmatpush.msra.mxu0 0.0
  %638 = vmatpush.msra.mxu0 0.0
  %639 = vmatpush.msra.mxu0 %v562
  %640 = vmatpush.msra.mxu0 %v558
  %641 = vmatpush.msra.mxu0 %v554
  %642 = vmatpush.msra.mxu0 %v550
  %643 = vmatmul.f32.gmra.mxu0 %v565
  %v644 = vpop.f32.mrf.mxu0
  %v645 = vadd.f32 0.0, %v644
  %646 = vdwg.mxu0
  %v647 = vld [vmem:[%s7] sm:$0x3]
  %v648 = vld [vmem:[%s8] sm:$0x3]
  %v650 = vsel %vm418, %v648, 0
  %652 = vmatpush.msra.mxu0 0.0
  %653 = vmatpush.msra.mxu0 0.0
  %654 = vmatpush.msra.mxu0 0.0
  %655 = vmatpush.msra.mxu0 0.0
  %656 = vmatpush.msra.mxu0 0.0
  %657 = vmatpush.msra.mxu0 0.0
  %658 = vmatpush.msra.mxu0 0.0
  %659 = vmatpush.msra.mxu0 0.0
  %660 = vmatpush.msra.mxu0 0.0
  %661 = vmatpush.msra.mxu0 0.0
  %662 = vmatpush.msra.mxu0 0.0
  %663 = vmatpush.msra.mxu0 0.0
  %664 = vmatpush.msra.mxu0 %v559
  %665 = vmatpush.msra.mxu0 %v555
  %666 = vmatpush.msra.mxu0 %v551
  %667 = vmatpush.msra.mxu0 %v547
  %668 = vmatmul.f32.gmra.mxu0 %v650
  %v669 = vpop.f32.mrf.mxu0
  %v670 = vadd.f32 0.0, %v669
  %671 = vdwg.mxu0
  %672 = vmatpush.msra.mxu0 0.0
  %673 = vmatpush.msra.mxu0 0.0
  %674 = vmatpush.msra.mxu0 0.0
  %675 = vmatpush.msra.mxu0 0.0
  %676 = vmatpush.msra.mxu0 0.0
  %677 = vmatpush.msra.mxu0 0.0
  %678 = vmatpush.msra.mxu0 0.0
  %679 = vmatpush.msra.mxu0 0.0
  %680 = vmatpush.msra.mxu0 0.0
  %681 = vmatpush.msra.mxu0 0.0
  %682 = vmatpush.msra.mxu0 0.0
  %683 = vmatpush.msra.mxu0 0.0
  %684 = vmatpush.msra.mxu0 %v560
  %685 = vmatpush.msra.mxu0 %v556
  %686 = vmatpush.msra.mxu0 %v552
  %687 = vmatpush.msra.mxu0 %v548
  %688 = vmatmul.f32.gmra.mxu0 %v650
  %v689 = vpop.f32.mrf.mxu0
  %v690 = vadd.f32 0.0, %v689
  %691 = vdwg.mxu0
  %692 = vmatpush.msra.mxu0 0.0
  %693 = vmatpush.msra.mxu0 0.0
  %694 = vmatpush.msra.mxu0 0.0
  %695 = vmatpush.msra.mxu0 0.0
  %696 = vmatpush.msra.mxu0 0.0
  %697 = vmatpush.msra.mxu0 0.0
  %698 = vmatpush.msra.mxu0 0.0
  %699 = vmatpush.msra.mxu0 0.0
  %700 = vmatpush.msra.mxu0 0.0
  %701 = vmatpush.msra.mxu0 0.0
  %702 = vmatpush.msra.mxu0 0.0
  %703 = vmatpush.msra.mxu0 0.0
  %704 = vmatpush.msra.mxu0 %v561
  %705 = vmatpush.msra.mxu0 %v557
  %706 = vmatpush.msra.mxu0 %v553
  %707 = vmatpush.msra.mxu0 %v549
  %708 = vmatmul.f32.gmra.mxu0 %v650
  %v709 = vpop.f32.mrf.mxu0
  %v710 = vadd.f32 0.0, %v709
  %711 = vdwg.mxu0
  %712 = vmatpush.msra.mxu0 0.0
  %713 = vmatpush.msra.mxu0 0.0
  %714 = vmatpush.msra.mxu0 0.0
  %715 = vmatpush.msra.mxu0 0.0
  %716 = vmatpush.msra.mxu0 0.0
  %717 = vmatpush.msra.mxu0 0.0
  %718 = vmatpush.msra.mxu0 0.0
  %719 = vmatpush.msra.mxu0 0.0
  %720 = vmatpush.msra.mxu0 0.0
  %721 = vmatpush.msra.mxu0 0.0
  %722 = vmatpush.msra.mxu0 0.0
  %723 = vmatpush.msra.mxu0 0.0
  %724 = vmatpush.msra.mxu0 %v562
  %725 = vmatpush.msra.mxu0 %v558
  %726 = vmatpush.msra.mxu0 %v554
  %727 = vmatpush.msra.mxu0 %v550
  %728 = vmatmul.f32.gmra.mxu0 %v650
  %v729 = vpop.f32.mrf.mxu0
  %v730 = vadd.f32 0.0, %v729
  %731 = vdwg.mxu0
  %v732 = vld [vmem:[%s11] sm:$0x3]
  %734 = vset.pattern.permute.xlu0 0
  %735 = vperm.xlu0 %734, %v732
  %v736 = vpop.permute.xlu0 %735
  %v739 = vsel %vm418, %v647, 0
  %741 = vmatpush.msra.mxu0 0.0
  %742 = vmatpush.msra.mxu0 0.0
  %743 = vmatpush.msra.mxu0 0.0
  %744 = vmatpush.msra.mxu0 0.0
  %745 = vmatpush.msra.mxu0 0.0
  %746 = vmatpush.msra.mxu0 0.0
  %747 = vmatpush.msra.mxu0 0.0
  %748 = vmatpush.msra.mxu0 0.0
  %749 = vmatpush.msra.mxu0 0.0
  %750 = vmatpush.msra.mxu0 0.0
  %751 = vmatpush.msra.mxu0 0.0
  %752 = vmatpush.msra.mxu0 0.0
  %753 = vmatpush.msra.mxu0 %v559
  %754 = vmatpush.msra.mxu0 %v555
  %755 = vmatpush.msra.mxu0 %v551
  %756 = vmatpush.msra.mxu0 %v547
  %757 = vmatmul.f32.gmra.mxu0 %v739
  %v758 = vpop.f32.mrf.mxu0
  %v759 = vadd.f32 %v736, %v758
  %760 = vdwg.mxu0
  %761 = vmatpush.msra.mxu0 0.0
  %762 = vmatpush.msra.mxu0 0.0
  %763 = vmatpush.msra.mxu0 0.0
  %764 = vmatpush.msra.mxu0 0.0
  %765 = vmatpush.msra.mxu0 0.0
  %766 = vmatpush.msra.mxu0 0.0
  %767 = vmatpush.msra.mxu0 0.0
  %768 = vmatpush.msra.mxu0 0.0
  %769 = vmatpush.msra.mxu0 0.0
  %770 = vmatpush.msra.mxu0 0.0
  %771 = vmatpush.msra.mxu0 0.0
  %772 = vmatpush.msra.mxu0 0.0
  %773 = vmatpush.msra.mxu0 %v560
  %774 = vmatpush.msra.mxu0 %v556
  %775 = vmatpush.msra.mxu0 %v552
  %776 = vmatpush.msra.mxu0 %v548
  %777 = vmatmul.f32.gmra.mxu0 %v739
  %v778 = vpop.f32.mrf.mxu0
  %v779 = vadd.f32 %v736, %v778
  %780 = vdwg.mxu0
  %781 = vmatpush.msra.mxu0 0.0
  %782 = vmatpush.msra.mxu0 0.0
  %783 = vmatpush.msra.mxu0 0.0
  %784 = vmatpush.msra.mxu0 0.0
  %785 = vmatpush.msra.mxu0 0.0
  %786 = vmatpush.msra.mxu0 0.0
  %787 = vmatpush.msra.mxu0 0.0
  %788 = vmatpush.msra.mxu0 0.0
  %789 = vmatpush.msra.mxu0 0.0
  %790 = vmatpush.msra.mxu0 0.0
  %791 = vmatpush.msra.mxu0 0.0
  %792 = vmatpush.msra.mxu0 0.0
  %793 = vmatpush.msra.mxu0 %v561
  %794 = vmatpush.msra.mxu0 %v557
  %795 = vmatpush.msra.mxu0 %v553
  %796 = vmatpush.msra.mxu0 %v549
  %797 = vmatmul.f32.gmra.mxu0 %v739
  %v798 = vpop.f32.mrf.mxu0
  %v799 = vadd.f32 %v736, %v798
  %800 = vdwg.mxu0
  %801 = vmatpush.msra.mxu0 0.0
  %802 = vmatpush.msra.mxu0 0.0
  %803 = vmatpush.msra.mxu0 0.0
  %804 = vmatpush.msra.mxu0 0.0
  %805 = vmatpush.msra.mxu0 0.0
  %806 = vmatpush.msra.mxu0 0.0
  %807 = vmatpush.msra.mxu0 0.0
  %808 = vmatpush.msra.mxu0 0.0
  %809 = vmatpush.msra.mxu0 0.0
  %810 = vmatpush.msra.mxu0 0.0
  %811 = vmatpush.msra.mxu0 0.0
  %812 = vmatpush.msra.mxu0 0.0
  %813 = vmatpush.msra.mxu0 %v562
  %814 = vmatpush.msra.mxu0 %v558
  %815 = vmatpush.msra.mxu0 %v554
  %816 = vmatpush.msra.mxu0 %v550
  %817 = vmatmul.f32.gmra.mxu0 %v739
  %v818 = vpop.f32.mrf.mxu0
  %v819 = vadd.f32 %v736, %v818
  %820 = vdwg.mxu0
  %v821 = vld [vmem:[%s9] sm:$0x3]
  %822 = vrot.lane.b32.xlu0 %v585, 16
  %v823 = vpop.permute.xlu0 %822
  %824 = vrot.lane.b32.xlu0 %v605, 16
  %v825 = vpop.permute.xlu0 %824
  %826 = vrot.lane.b32.xlu0 %v625, 16
  %v827 = vpop.permute.xlu0 %826
  %828 = vrot.lane.b32.xlu0 %v645, 16
  %v829 = vpop.permute.xlu0 %828
  %v830 = vsel %vm121, %v827, %v829
  %v831 = vsel %vm121, %v825, %v827
  %v832 = vsel %vm121, %v823, %v825
  %v833 = vsel %vm121, %v829, %v823
  %835 = vset.pattern.permute.xlu0 0
  %836 = vperm.xlu0 %835, %v821
  %v837 = vpop.permute.xlu0 %836
  %v839 = vsel %vm130, %v837, %v833
  %v840 = vsel %vm131, %v837, %v832
  %v841 = vsel %vm132, %v837, %v831
  %v842 = vsel %vm133, %v837, %v830
  %v843 = vadd.f32 %v759, %v839
  %v844 = vadd.f32 %v779, %v840
  %v845 = vadd.f32 %v799, %v841
  %v846 = vadd.f32 %v819, %v842
  %v847 = vld [vmem:[%s10] sm:$0x3]
  %848 = vrot.lane.b32.xlu0 %v670, 112
  %v849 = vpop.permute.xlu0 %848
  %850 = vrot.lane.b32.xlu0 %v690, 112
  %v851 = vpop.permute.xlu0 %850
  %852 = vrot.lane.b32.xlu0 %v710, 112
  %v853 = vpop.permute.xlu0 %852
  %854 = vrot.lane.b32.xlu0 %v730, 112
  %v855 = vpop.permute.xlu0 %854
  %v856 = vsel %vm155, %v853, %v855
  %v857 = vsel %vm155, %v851, %v853
  %v858 = vsel %vm155, %v849, %v851
  %v859 = vsel %vm155, %v855, %v849
  %861 = vset.pattern.permute.xlu0 0
  %862 = vperm.xlu0 %861, %v847
  %v863 = vpop.permute.xlu0 %862
  %v865 = vsel %vm164, %v863, %v858
  %v866 = vsel %vm165, %v863, %v857
  %v867 = vsel %vm166, %v863, %v856
  %v868 = vsel %vm167, %v863, %v859
  %v869 = vadd.f32 %v843, %v865
  %v870 = vadd.f32 %v844, %v866
  %v871 = vadd.f32 %v845, %v867
  %v872 = vadd.f32 %v846, %v868
  %v873 = vld [vmem:[%s1] sm:$0xff]
  %v878 = vrot.slane %v870, 6
  %v879 = vrot.slane %v871, 4
  %v880 = vrot.slane %v872, 2
  %v881 = vsel %vm194, %v869, %v878
  %vm882 = vcmask 1045508
  %v883 = vsel %vm882, %v879, %v880
  %v884 = vsel %vm199, %v881, %v883
  %v886 = vadd.f32 %v873, %v884
  %887 = vst [vmem:[%s12] sm:$0xff] %v886
  // Predicated region
  $region50: #{affine_coupling_forward.1} parent=0 // pred_check
    _
  $region51: #{affine_coupling_forward.1} parent=0 // pred_check_branch
    %889 = sbr.rel (0) target = $region53
  $region52: #{affine_coupling_forward.1} parent=0 // pred_region
    _
  $region53: #{affine_coupling_forward.1} parent=0 // pred_fallthru
    _
  // Predicated region
  $region54: #{affine_coupling_forward.1} parent=0 // pred_check
    _
  $region55: #{affine_coupling_forward.1} parent=0 // pred_check_branch
    %891 = sbr.rel (0) target = $region57
  $region56: #{affine_coupling_forward.1} parent=0 // pred_region
    _
  $region57: #{affine_coupling_forward.1} parent=0 // pred_fallthru
    _

</llo_original>
